<compile_context>
chip_gen: v7x
topology: tpu7x:2x2x1
jax: 0.10.0
libtpu: 0.0.40
codegen_flags: <defaults>
</compile_context>

<pallas_src>
import math

import jax
import jax.numpy as jnp
from jax.experimental import pallas as pl
from jax.experimental.pallas import tpu as pltpu


# ---------------------------------------------------------------------------
# Label generation (plain-JAX glue).
# ---------------------------------------------------------------------------
def generate_labels(key, bs, rate, low, high, step, up=True):
    soft = jax.random.uniform(key, (bs, 1), minval=low, maxval=high,
                              dtype=jnp.float32)
    hard = jnp.full((bs, 1), 1.0 if up else 0.0, dtype=jnp.float32)
    mix = jnp.exp(-rate * jnp.asarray(step, jnp.float32))
    return mix * soft + (1.0 - mix) * hard


# ---------------------------------------------------------------------------
# Pallas kernel: single fused BCE(real) + BCE(fake) over one packed tile.
# ---------------------------------------------------------------------------
def _make_disc_loss_kernel(inv_n, half_cols):
    def kernel(x_ref, out_ref):
        # Both slices are (8, half_cols) and 128-lane aligned (no relayout).
        p = x_ref[:, :half_cols]
        y = x_ref[:, half_cols:]
        # PyTorch BCELoss clamps the log terms at -100 for stability.
        logp = jnp.maximum(jnp.log(p), -100.0)
        log1mp = jnp.maximum(jnp.log(1.0 - p), -100.0)
        bce = -(y * logp + (1.0 - y) * log1mp)
        # mean_real + mean_fake == sum(all elements) / bs  (each loss has
        # exactly bs elements; zero-padded lanes contribute exactly 0).
        out_ref[0] = jnp.sum(bce) * inv_n
    return kernel


def _pack_pair(a, b, cols):
    """Flatten a and b, zero-pad to 8*cols elements, reshape lane-dense (8, cols)."""
    flat = jnp.concatenate(
        [a.reshape(-1).astype(jnp.float32), b.reshape(-1).astype(jnp.float32)])
    flat = jnp.pad(flat, (0, 8 * cols - flat.shape[0]))
    return flat.reshape(8, cols)


def discriminator_loss(true_preds, fake_preds, step, *, key):
    bs = true_preds.shape[0]
    k_real, k_fake = jax.random.split(key)
    y_real = generate_labels(k_real, bs, 0.3, 0.7, 1.0, step, up=True)
    y_fake = generate_labels(k_fake, bs, 0.3, 0.0, 0.3, step, up=False)

    # Lane-dense packing: 2*bs prediction elements (and 2*bs label elements)
    # spread over 8 sublanes x `cols` lanes, cols a multiple of 128.
    cols = max(128, math.ceil(2 * bs / (8 * 128)) * 128)
    p_packed = _pack_pair(true_preds, fake_preds, cols)
    y_packed = _pack_pair(y_real, y_fake, cols)
    packed = jnp.concatenate([p_packed, y_packed], axis=1)  # (8, 2*cols)

    kernel = _make_disc_loss_kernel(1.0 / bs, cols)
    out = pl.pallas_call(
        kernel,
        out_shape=jax.ShapeDtypeStruct((1,), jnp.float32),
        grid_spec=pltpu.PrefetchScalarGridSpec(
            num_scalar_prefetch=0,
            grid=(),
            in_specs=[pl.BlockSpec((8, 2 * cols), lambda: (0, 0))],
            out_specs=pl.BlockSpec(memory_space=pltpu.SMEM),
        ),
    )(packed)
    return out[0]


if __name__ == "__main__":
    key = jax.random.PRNGKey(0)
    k_tp, k_fp, k_labels = jax.random.split(key, 3)

    bs = 8
    # Discriminator probabilities in (0, 1): pass logits through sigmoid.
    true_preds = jax.nn.sigmoid(jax.random.normal(k_tp, (bs, 1), jnp.float32))
    fake_preds = jax.nn.sigmoid(jax.random.normal(k_fp, (bs, 1), jnp.float32))
    step = 5

    loss = discriminator_loss(true_preds, fake_preds, step, key=k_labels)
    jax.block_until_ready(loss)

    # Pure-JAX reference check (same labels / same clamped BCE).
    k_real, k_fake = jax.random.split(k_labels)
    y_real = generate_labels(k_real, bs, 0.3, 0.7, 1.0, step, up=True)
    y_fake = generate_labels(k_fake, bs, 0.3, 0.0, 0.3, step, up=False)

    def bce(p, y):
        logp = jnp.maximum(jnp.log(p), -100.0)
        log1mp = jnp.maximum(jnp.log(1.0 - p), -100.0)
        return jnp.mean(-(y * logp + (1.0 - y) * log1mp))

    ref = bce(true_preds, y_real) + bce(fake_preds, y_fake)
    assert jnp.allclose(loss, ref, rtol=1e-5, atol=1e-5), (loss, ref)

    print("KERNEL_OK")
</pallas_src>

<mosaic_0001>
module attributes {stable_mosaic.version = 11 : i64} {
  func.func @kernel(%arg0: memref<8x256xf32, #tpu.memory_space<vmem>>, %arg1: memref<1xf32, #tpu.memory_space<smem>>) attributes {dimension_semantics = [], scalar_prefetch = 0 : i64, scratch_operands = 0 : i64, tpu.core_type = #tpu.core_type<tc>} {
    %c0 = arith.constant 0 : index
    %c0_0 = arith.constant 0 : index
    %0 = vector.load %arg0[%c0, %c0_0] : memref<8x256xf32, #tpu.memory_space<vmem>>, vector<8x128xf32>
    %c0_1 = arith.constant 0 : index
    %c128 = arith.constant 128 : index
    %1 = vector.load %arg0[%c0_1, %c128] : memref<8x256xf32, #tpu.memory_space<vmem>>, vector<8x128xf32>
    %2 = math.log %0 : vector<8x128xf32>
    %cst = arith.constant -1.000000e+02 : f32
    %3 = vector.broadcast %cst : f32 to vector<8x128xf32>
    %4 = arith.maximumf %2, %3 : vector<8x128xf32>
    %cst_2 = arith.constant 1.000000e+00 : f32
    %5 = vector.broadcast %cst_2 : f32 to vector<8x128xf32>
    %6 = arith.subf %5, %0 : vector<8x128xf32>
    %7 = math.log %6 : vector<8x128xf32>
    %cst_3 = arith.constant -1.000000e+02 : f32
    %8 = vector.broadcast %cst_3 : f32 to vector<8x128xf32>
    %9 = arith.maximumf %7, %8 : vector<8x128xf32>
    %10 = arith.mulf %1, %4 : vector<8x128xf32>
    %cst_4 = arith.constant 1.000000e+00 : f32
    %11 = vector.broadcast %cst_4 : f32 to vector<8x128xf32>
    %12 = arith.subf %11, %1 : vector<8x128xf32>
    %13 = arith.mulf %12, %9 : vector<8x128xf32>
    %14 = arith.addf %10, %13 : vector<8x128xf32>
    %cst_5 = arith.constant 0.000000e+00 : f32
    %15 = vector.broadcast %cst_5 : f32 to vector<8x128xf32>
    %16 = arith.subf %15, %14 : vector<8x128xf32>
    %17 = vector.shape_cast %16 : vector<8x128xf32> to vector<1x8x128xf32>
    %cst_6 = arith.constant dense<0.000000e+00> : vector<1xf32>
    %18 = vector.multi_reduction <add>, %17, %cst_6 [1, 2] : vector<1x8x128xf32> to vector<1xf32>
    %19 = vector.shape_cast %18 : vector<1xf32> to vector<1x1x1xf32>
    %20 = vector.extract %19[0, 0, 0] : f32 from vector<1x1x1xf32>
    %cst_7 = arith.constant 1.250000e-01 : f32
    %21 = arith.mulf %20, %cst_7 : f32
    %c0_8 = arith.constant 0 : index
    %22 = memref.load %arg1[%c0_8] : memref<1xf32, #tpu.memory_space<smem>>
    memref.store %21, %arg1[%c0_8] : memref<1xf32, #tpu.memory_space<smem>>
    return
  }
}

</mosaic_0001>

<llo_original>
// kernel: tpu_custom_call.1
$region0: #{tpu_custom_call.1}
  #allocation0 [shape = 'u32[]', space=smem, size = 0x4, offset = 0x4, fixed_abs, tag = 'smem constant byte address 0x4 - core index']
  #allocation1 [shape = 'u32[144,128]{1,0:T(1,128)}', space=vmem, size = 0x12000, scoped, tag = 'internal scratch']
  %s0 = inlined_call_operand.hbm [shape: f32[8,256], index: 0, kind: input, shape index: {}]
  %s1 = inlined_call_operand.hbm [shape: f32[1], index: 1, kind: output, shape index: {}]
  %s2 = sld [smem:[#allocation0]]
  $region18: #{tpu_custom_call.1} parent=0
    _
  %s4 = ssub.s32 1, %s2
  %s5 = scalar_select 0, %s4, %s2
  $region1: #{tpu_custom_call.1} parent=0
    #allocation2 [shape = 'u8[8192]{0}', space=vmem, size = 0x2000, scoped, tag = 'input window, operand 0, single buffered']
    #allocation3 [shape = 's32[1]{0}', space=sflag, size = 0x4, scoped, tag = 'scoped memory for tpu_custom_call.1']
    #allocation4 [shape = 's32[1]{0}', space=sflag, size = 0x4, scoped, tag = 'scoped memory for tpu_custom_call.1']
    #allocation5 [shape = 'u8[512]{0}', space=smem, size = 0x200, scoped, tag = 'output window, operand 0, single buffered']
    %6 = vsyncpa [#allocation3], 0
    %7 = vsyncpa [#allocation4], 0
    // Predicated region
    $region2: #{tpu_custom_call.1} parent=1 // pred_check
      _
    $region3: #{tpu_custom_call.1} parent=1 // pred_check_branch
      %9 = sbr.rel (0) target = $region5
    $region4: #{tpu_custom_call.1} parent=1 // pred_region
      %s11 = ssub.s32 256, 256
      %12 = vsyncadd [#allocation3], %s11
      %s14 = sshll.u32 [#allocation2], 4
      %s15 = int_to_ptr.vmem [resolvable:$true] %s14
      %17 = dma.hbm_to_vmem [thread:$0]  %s0, 256, %s15, [#allocation3]
    $region5: #{tpu_custom_call.1} parent=1 // pred_fallthru
      _
    // Predicated region
    $region6: #{tpu_custom_call.1} parent=1 // pred_check
      _
    $region7: #{tpu_custom_call.1} parent=1 // pred_check_branch
      %19 = sbr.rel (0) target = $region9
    $region8: #{tpu_custom_call.1} parent=1 // pred_region
      %20 = dma.done [#allocation3], 256
    $region9: #{tpu_custom_call.1} parent=1 // pred_fallthru
      _
    %v21 = vld [vmem:[#allocation2] sm:$0xff]
    %v22 = vld [vmem:[#allocation2 + $0x8] sm:$0xff]
    %v23 = vlog2.pop %v21
    %v24 = vmul.f32 %v23, 0.6931472
    %v25 = vmax.f32 %v24, -100.0
    %v26 = vsub.f32 1.0, %v21
    %v27 = vlog2.pop %v26
    %v28 = vmul.f32 %v27, 0.6931472
    %v29 = vmax.f32 %v28, -100.0
    %v30 = vmul.f32 %v22, %v25
    %v31 = vsub.f32 1.0, %v22
    %v32 = vmul.f32 %v31, %v29
    %v33 = vadd.f32 %v30, %v32
    %v34 = vsub.f32 0.0, %v33
    %35 = vadd.xlane.f32.xlu0 %v34
    %v36 = vpop.xlane.xlu0 %35
    %v37 = vrot.slane %v36, 4
    %v38 = vadd.f32 %v36, %v37
    %v39 = vrot.slane %v38, 2
    %v40 = vadd.f32 %v38, %v39
    %v41 = vrot.slane %v40, 1
    %v42 = vadd.f32 %v40, %v41
    %s43 = vtos %v42
    %s44 = smul.f32 %s43, 0.125
    %s45 = scalar_lea.smem [#allocation5], 0
    %46 = sst [smem:[%s45]] %s44
    // Predicated region
    $region10: #{tpu_custom_call.1} parent=1 // pred_check
      _
    $region11: #{tpu_custom_call.1} parent=1 // pred_check_branch
      %48 = sbr.rel (0) target = $region13
    $region12: #{tpu_custom_call.1} parent=1 // pred_region
      %s50 = ssub.s32 16, 16
      %51 = vsyncadd [#allocation4], %s50
      %54 = dma.smem_to_hbm [#allocation5], 16, %s1, [#allocation4]
    $region13: #{tpu_custom_call.1} parent=1 // pred_fallthru
      _
    // Predicated region
    $region14: #{tpu_custom_call.1} parent=1 // pred_check
      _
    $region15: #{tpu_custom_call.1} parent=1 // pred_check_branch
      %56 = sbr.rel (0) target = $region17
    $region16: #{tpu_custom_call.1} parent=1 // pred_region
      %57 = dma.done [#allocation4], 16
    $region17: #{tpu_custom_call.1} parent=1 // pred_fallthru
      _
    %58 = sfence
    %59 = vsyncpa [#allocation3], 1
    %60 = vsyncpa [#allocation4], 1

</llo_original>
